<compile_context>
chip_gen: v6e
topology: v6e:2x2x1
jax: 0.10.0
libtpu: 0.0.40
codegen_flags: <defaults>
</compile_context>

<pallas_src>
import jax
import jax.numpy as jnp
from jax.experimental import pallas as pl
from jax.experimental.pallas import tpu as pltpu


# ----------------------------------------------------------------------------
# Small host-side helpers.
# ----------------------------------------------------------------------------
def _cdiv(a, b):
    return -(-a // b)


def _round_up(v, m):
    return ((v + m - 1) // m) * m


def _sublane(dtype):
    itemsize = jnp.dtype(dtype).itemsize
    return 8 if itemsize >= 4 else (16 if itemsize == 2 else 32)


def _vmem_budget_bytes():
    """~75% of physical VMEM: ~48 MiB on v7x, ~96 MiB on v5e/v6e."""
    cap = 128 << 20
    try:
        cap = int(getattr(pltpu.get_tpu_info(), "vmem_capacity_bytes", cap))
    except Exception:  # not on a TPU / API unavailable at trace time
        pass
    return int(min(cap * 3 // 4, 100 << 20))


def _largest_aligned_divisor(total, align, cap):
    """Largest multiple of `align` that divides `total` and is <= cap."""
    best = align
    t = align
    limit = min(total, cap)
    while t <= limit:
        if total % t == 0:
            best = t
        t += align
    return best


# ----------------------------------------------------------------------------
# Kernels.  Weights are pre-transposed: W_enc^T is [d_in, d_lat], W_dec^T is
# [d_lat, d_in], so both matmuls are canonical [M, K] @ [K, N] on the MXU.
# ----------------------------------------------------------------------------
def _sae_fused_kernel(x_ref, we_ref, be_ref, wd_ref, bd_ref, enc_ref, dec_ref):
    """Weights fully resident in VMEM: single latent tile, no reduction."""
    enc = jnp.dot(x_ref[...], we_ref[...],
                  preferred_element_type=jnp.float32) + be_ref[...]
    enc_ref[...] = enc.astype(enc_ref.dtype)
    dec = jnp.dot(enc.astype(wd_ref.dtype), wd_ref[...],
                  preferred_element_type=jnp.float32) + bd_ref[...]
    dec_ref[...] = dec.astype(dec_ref.dtype)


def _sae_reduce_f32_kernel(x_ref, we_ref, be_ref, wd_ref, bd_ref, enc_ref, dec_ref):
    """Latent reduction; f32 decoded output accumulated directly in dec_ref
    (resident across the latent grid axis), no separate scratch."""
    l = pl.program_id(1)
    enc = jnp.dot(x_ref[...], we_ref[...],
                  preferred_element_type=jnp.float32) + be_ref[...]
    enc_ref[...] = enc.astype(enc_ref.dtype)
    partial = jnp.dot(enc.astype(wd_ref.dtype), wd_ref[...],
                      preferred_element_type=jnp.float32)

    @pl.when(l == 0)
    def _():
        dec_ref[...] = partial + bd_ref[...]

    @pl.when(l > 0)
    def _():
        dec_ref[...] += partial


def _sae_reduce_scratch_kernel(x_ref, we_ref, be_ref, wd_ref, bd_ref,
                               enc_ref, dec_ref, acc_ref):
    """Latent reduction for sub-f32 output dtypes: f32 scratch accumulator."""
    l = pl.program_id(1)
    enc = jnp.dot(x_ref[...], we_ref[...],
                  preferred_element_type=jnp.float32) + be_ref[...]
    enc_ref[...] = enc.astype(enc_ref.dtype)

    @pl.when(l == 0)
    def _():
        acc_ref[...] = jnp.zeros_like(acc_ref)

    acc_ref[...] += jnp.dot(enc.astype(wd_ref.dtype), wd_ref[...],
                            preferred_element_type=jnp.float32)

    @pl.when(l == pl.num_programs(1) - 1)
    def _():
        dec_ref[...] = (acc_ref[...] + bd_ref[...]).astype(dec_ref.dtype)


# ----------------------------------------------------------------------------
# Parameter preparation (do ONCE at init, not per forward).
# ----------------------------------------------------------------------------
def prepare_sae_params(w_enc, b_enc, w_dec, b_dec):
    """Pad + transpose the PyTorch-layout parameters once into MXU-friendly
    [K, N] layout.  w_enc: [D_lat, D_in], w_dec: [D_in, D_lat]."""
    dtype = w_enc.dtype
    D_lat, D_in = w_enc.shape
    d_in_p = _round_up(D_in, 128)
    d_lat_p = _round_up(D_lat, 128)

    def pad2(a, shape):
        if a.shape == shape:
            return a
        return jnp.pad(a, [(0, s - d) for d, s in zip(a.shape, shape)])

    we_t = pad2(jnp.transpose(w_enc), (d_in_p, d_lat_p))   # [D_in, D_lat] padded
    wd_t = pad2(jnp.transpose(w_dec), (d_lat_p, d_in_p))   # [D_lat, D_in] padded
    be = pad2(b_enc.reshape(1, D_lat), (1, d_lat_p))
    bd = pad2(b_dec.reshape(1, D_in), (1, d_in_p))
    return dict(we_t=we_t, be=be, wd_t=wd_t, bd=bd,
                input_dim=D_in, latent_dim=D_lat, dtype=dtype)


# ----------------------------------------------------------------------------
# Tile selection under a VMEM budget.
# ----------------------------------------------------------------------------
def _pick_tiles(b_p, d_in_p, d_lat_p, sub, itemsize, needs_scratch,
                budget, max_latent_tile):
    """Return (tb, n_b, tl, n_l)."""

    def max_tb_fitting(tl):
        # Linear VMEM model (double-buffered blocks + optional f32 scratch).
        per_tb = ((2 * d_in_p             # x tile
                   + 2 * tl               # encoded out tile
                   + 2 * d_in_p)          # decoded out tile
                  * itemsize
                  + (d_in_p * 4 if needs_scratch else 0))
        const = (4 * d_in_p * tl          # W_enc^T + W_dec^T tiles (x2 buffers)
                 + 16 * tl                # b_enc (sublane-padded, x2 buffers)
                 + 16 * d_in_p) * itemsize  # b_dec
        if const + sub * per_tb > budget:
            return None
        tb = min(((budget - const) // per_tb) // sub * sub, b_p)
        return int(max(tb, sub))

    lat_cap = d_lat_p if max_latent_tile is None else min(max_latent_tile, d_lat_p)

    # --- Fast path: both weights resident in VMEM (single latent tile).
    if lat_cap >= d_lat_p:
        tb_fit = max_tb_fitting(d_lat_p)
        if tb_fit is not None:
            n_b = _cdiv(b_p, tb_fit)
            if n_b == 1 and b_p >= 2 * sub:
                n_b = 2   # keep both v7x TensorCores busy; weights stay resident
            tb = _round_up(_cdiv(b_p, n_b), sub)
            n_b = _cdiv(b_p, tb)
            return tb, n_b, d_lat_p, 1

    # --- Reduction path: weights streamed once per batch tile -> maximize tb,
    #     latent tile a 128-multiple that divides d_lat_p (no over-padding).
    best = None
    caps = sorted({min(c, lat_cap) for c in (512, 256, 128)}, reverse=True)
    for cap in caps:
        tl = _largest_aligned_divisor(d_lat_p, 128, cap)
        tb_fit = max_tb_fitting(tl)
        if tb_fit is None:
            continue
        if best is None or (tb_fit, tl) > best:
            best = (tb_fit, tl)
    if best is None:
        tb_fit, tl = sub, 128          # last resort for absurdly large d_in
    else:
        tb_fit, tl = best
    n_b = _cdiv(b_p, tb_fit)
    tb = _round_up(_cdiv(b_p, n_b), sub)
    n_b = _cdiv(b_p, tb)
    n_l = _cdiv(d_lat_p, tl)
    return tb, n_b, tl, n_l


# ----------------------------------------------------------------------------
# Forward pass.
# ----------------------------------------------------------------------------
def sae_forward_prepared(x, params, *, max_latent_tile=None, vmem_budget_bytes=None):
    dtype = params["dtype"]
    if x.dtype != dtype:
        x = x.astype(dtype)

    D_in, D_lat = params["input_dim"], params["latent_dim"]
    we_t, be, wd_t, bd = params["we_t"], params["be"], params["wd_t"], params["bd"]
    d_in_p, d_lat_p = we_t.shape

    B = x.shape[0]
    itemsize = jnp.dtype(dtype).itemsize
    sub = _sublane(dtype)
    b_p = _round_up(B, sub)

    budget = int(vmem_budget_bytes or _vmem_budget_bytes())
    needs_scratch = dtype != jnp.float32
    tb, n_b, tl, n_l = _pick_tiles(b_p, d_in_p, d_lat_p, sub, itemsize,
                                   needs_scratch, budget, max_latent_tile)
    b_pad = n_b * tb

    # Pad activations (parameters were padded once in prepare_sae_params).
    if x.shape != (b_pad, d_in_p):
        x = jnp.pad(x, ((0, b_pad - B), (0, d_in_p - D_in)))

    if n_l == 1:
        kernel = _sae_fused_kernel
        scratch_shapes = []
    elif not needs_scratch:
        kernel = _sae_reduce_f32_kernel
        scratch_shapes = []
    else:
        kernel = _sae_reduce_scratch_kernel
        scratch_shapes = [pltpu.VMEM((tb, d_in_p), jnp.float32)]

    # Advisory cost hint: weights re-stream once per batch tile unless resident.
    weight_streams = 1 if n_l == 1 else n_b
    bytes_accessed = int(itemsize * (x.size
                                     + weight_streams * (we_t.size + wd_t.size)
                                     + be.size + bd.size
                                     + b_pad * d_lat_p + b_pad * d_in_p))
    flops = 4 * b_pad * d_in_p * d_lat_p

    enc_p, dec_p = pl.pallas_call(
        kernel,
        out_shape=(jax.ShapeDtypeStruct((b_pad, d_lat_p), dtype),
                   jax.ShapeDtypeStruct((b_pad, d_in_p), dtype)),
        grid_spec=pltpu.PrefetchScalarGridSpec(
            num_scalar_prefetch=0,
            grid=(n_b, n_l),                                        # latent last
            in_specs=[
                pl.BlockSpec((tb, d_in_p), lambda i, l: (i, 0)),    # x
                pl.BlockSpec((d_in_p, tl), lambda i, l: (0, l)),    # W_enc^T [K,N]
                pl.BlockSpec((1, tl),      lambda i, l: (0, l)),    # b_enc
                pl.BlockSpec((tl, d_in_p), lambda i, l: (l, 0)),    # W_dec^T [K,N]
                pl.BlockSpec((1, d_in_p),  lambda i, l: (0, 0)),    # b_dec
            ],
            out_specs=(
                pl.BlockSpec((tb, tl),     lambda i, l: (i, l)),    # encoded
                pl.BlockSpec((tb, d_in_p), lambda i, l: (i, 0)),    # decoded (resident)
            ),
            scratch_shapes=scratch_shapes,
        ),
        compiler_params=pltpu.CompilerParams(
            dimension_semantics=("parallel", "arbitrary"),
            vmem_limit_bytes=budget,
        ),
        cost_estimate=pl.CostEstimate(flops=flops, transcendentals=0,
                                      bytes_accessed=bytes_accessed),
    )(x, we_t, be, wd_t, bd)

    return enc_p[:B, :D_lat], dec_p[:B, :D_in]


def simple_sparse_sae_forward(x, w_enc, b_enc, w_dec, b_dec, **kwargs):
    """Convenience wrapper taking raw PyTorch-layout parameters.  In a real
    loop call prepare_sae_params() once and sae_forward_prepared() per step so
    the weight transpose/pad is off the hot path."""
    return sae_forward_prepared(x, prepare_sae_params(w_enc, b_enc, w_dec, b_dec),
                                **kwargs)


def _reference(x, w_enc, b_enc, w_dec, b_dec):
    enc = x @ w_enc.T + b_enc
    dec = enc @ w_dec.T + b_dec
    return enc, dec


if __name__ == "__main__":
    key = jax.random.PRNGKey(0)

    # --- Test 1: tiny f32 shapes (weights-resident fused path, n_l == 1).
    B, D_in, D_lat = 8, 32, 16
    kx, kwe, kbe, kwd, kbd, key = jax.random.split(key, 6)
    x = jax.random.normal(kx, (B, D_in), dtype=jnp.float32)
    w_enc = jax.random.normal(kwe, (D_lat, D_in), dtype=jnp.float32) * 0.1
    b_enc = jax.random.normal(kbe, (D_lat,), dtype=jnp.float32) * 0.1
    w_dec = jax.random.normal(kwd, (D_in, D_lat), dtype=jnp.float32) * 0.1
    b_dec = jax.random.normal(kbd, (D_in,), dtype=jnp.float32) * 0.1

    enc, dec = simple_sparse_sae_forward(x, w_enc, b_enc, w_dec, b_dec)
    jax.block_until_ready((enc, dec))
    enc_r, dec_r = _reference(x, w_enc, b_enc, w_dec, b_dec)
    assert enc.shape == (B, D_lat) and dec.shape == (B, D_in)
    assert jnp.allclose(enc, enc_r, atol=1e-5, rtol=1e-5)
    assert jnp.allclose(dec, dec_r, atol=1e-5, rtol=1e-5)

    # --- Test 2: non-aligned f32 shapes, latent-reduction path forced via
    #             max_latent_tile=128 (exercises direct dec_ref accumulation,
    #             D_lat=640 tiles exactly as 5 x 128, no over-padding).
    B2, D_in2, D_lat2 = 24, 160, 640
    kx, kwe, kbe, kwd, kbd, key = jax.random.split(key, 6)
    x2 = jax.random.normal(kx, (B2, D_in2), dtype=jnp.float32)
    w_enc2 = jax.random.normal(kwe, (D_lat2, D_in2), dtype=jnp.float32) * 0.05
    b_enc2 = jax.random.normal(kbe, (D_lat2,), dtype=jnp.float32) * 0.05
    w_dec2 = jax.random.normal(kwd, (D_in2, D_lat2), dtype=jnp.float32) * 0.05
    b_dec2 = jax.random.normal(kbd, (D_in2,), dtype=jnp.float32) * 0.05

    params2 = prepare_sae_params(w_enc2, b_enc2, w_dec2, b_dec2)
    enc2, dec2 = sae_forward_prepared(x2, params2, max_latent_tile=128)
    jax.block_until_ready((enc2, dec2))
    enc2_r, dec2_r = _reference(x2, w_enc2, b_enc2, w_dec2, b_dec2)
    assert enc2.shape == (B2, D_lat2) and dec2.shape == (B2, D_in2)
    assert jnp.allclose(enc2, enc2_r, atol=1e-4, rtol=1e-4)
    assert jnp.allclose(dec2, dec2_r, atol=1e-4, rtol=1e-4)

    # --- Test 3: bfloat16 params, reduction path -> f32 scratch accumulator.
    B3, D_in3, D_lat3 = 8, 128, 384
    kx, kwe, kbe, kwd, kbd, key = jax.random.split(key, 6)
    x3 = jax.random.normal(kx, (B3, D_in3), dtype=jnp.float32)
    w_enc3 = (jax.random.normal(kwe, (D_lat3, D_in3), dtype=jnp.float32) * 0.05
              ).astype(jnp.bfloat16)
    b_enc3 = (jax.random.normal(kbe, (D_lat3,), dtype=jnp.float32) * 0.05
              ).astype(jnp.bfloat16)
    w_dec3 = (jax.random.normal(kwd, (D_in3, D_lat3), dtype=jnp.float32) * 0.05
              ).astype(jnp.bfloat16)
    b_dec3 = (jax.random.normal(kbd, (D_in3,), dtype=jnp.float32) * 0.05
              ).astype(jnp.bfloat16)

    enc3, dec3 = simple_sparse_sae_forward(x3, w_enc3, b_enc3, w_dec3, b_dec3,
                                           max_latent_tile=128)
    jax.block_until_ready((enc3, dec3))
    x3b = x3.astype(jnp.bfloat16).astype(jnp.float32)
    enc3_r = x3b @ w_enc3.astype(jnp.float32).T + b_enc3.astype(jnp.float32)
    dec3_r = (enc3_r.astype(jnp.bfloat16).astype(jnp.float32)
              @ w_dec3.astype(jnp.float32).T + b_dec3.astype(jnp.float32))
    assert enc3.shape == (B3, D_lat3) and dec3.shape == (B3, D_in3)
    assert jnp.allclose(enc3.astype(jnp.float32), enc3_r, atol=5e-2, rtol=5e-2)
    assert jnp.allclose(dec3.astype(jnp.float32), dec3_r, atol=5e-2, rtol=5e-2)

    print("KERNEL_OK")
</pallas_src>

<mosaic_0001>
module attributes {stable_mosaic.version = 11 : i64} {
  func.func @_sae_fused_kernel(%arg0: i32, %arg1: i32, %arg2: memref<8x128xf32, #tpu.memory_space<vmem>>, %arg3: memref<128x128xf32, #tpu.memory_space<vmem>>, %arg4: memref<1x128xf32, #tpu.memory_space<vmem>>, %arg5: memref<128x128xf32, #tpu.memory_space<vmem>>, %arg6: memref<1x128xf32, #tpu.memory_space<vmem>>, %arg7: memref<8x128xf32, #tpu.memory_space<vmem>>, %arg8: memref<8x128xf32, #tpu.memory_space<vmem>>) attributes {dimension_semantics = [#tpu.dimension_semantics<parallel>, #tpu.dimension_semantics<arbitrary>], iteration_bounds = array<i64: 1, 1>, scalar_prefetch = 0 : i64, scratch_operands = 0 : i64, tpu.core_type = #tpu.core_type<tc>, window_params = [{transform_indices = @transform_0, window_bounds = array<i64: 8, 128>}, {transform_indices = @transform_1, window_bounds = array<i64: 128, 128>}, {transform_indices = @transform_2, window_bounds = array<i64: 1, 128>}, {transform_indices = @transform_3, window_bounds = array<i64: 128, 128>}, {pipeline_mode = #tpu.pipeline_mode<synchronous>, transform_indices = @transform_4, window_bounds = array<i64: 1, 128>}, {transform_indices = @transform_5, window_bounds = array<i64: 8, 128>}, {transform_indices = @transform_6, window_bounds = array<i64: 8, 128>}]} {
    %c0 = arith.constant 0 : index
    %c0_0 = arith.constant 0 : index
    %0 = vector.load %arg2[%c0, %c0_0] : memref<8x128xf32, #tpu.memory_space<vmem>>, vector<8x128xf32>
    %c0_1 = arith.constant 0 : index
    %c0_2 = arith.constant 0 : index
    %1 = vector.load %arg3[%c0_1, %c0_2] : memref<128x128xf32, #tpu.memory_space<vmem>>, vector<128x128xf32>
    %cst = arith.constant dense<0.000000e+00> : vector<8x128xf32>
    %2 = tpu.matmul %0, %1, %cst {dimension_numbers = #tpu.dot_dimension_numbers<[1], [0], [0], [1], [0, 0, 1, 1], [], []>} : vector<8x128xf32>, vector<128x128xf32>, vector<8x128xf32> -> vector<8x128xf32>
    %c0_3 = arith.constant 0 : index
    %c0_4 = arith.constant 0 : index
    %3 = vector.load %arg4[%c0_3, %c0_4] : memref<1x128xf32, #tpu.memory_space<vmem>>, vector<1x128xf32>
    %4 = vector.broadcast %3 : vector<1x128xf32> to vector<8x128xf32>
    %5 = arith.addf %2, %4 : vector<8x128xf32>
    %c0_5 = arith.constant 0 : index
    %c0_6 = arith.constant 0 : index
    %6 = vector.load %arg7[%c0_5, %c0_6] : memref<8x128xf32, #tpu.memory_space<vmem>>, vector<8x128xf32>
    tpu.vector_store %arg7[%c0_5, %c0_6], %5 {strides = array<i32>} : memref<8x128xf32, #tpu.memory_space<vmem>>, vector<8x128xf32>,
    %c0_7 = arith.constant 0 : index
    %c0_8 = arith.constant 0 : index
    %7 = vector.load %arg5[%c0_7, %c0_8] : memref<128x128xf32, #tpu.memory_space<vmem>>, vector<128x128xf32>
    %cst_9 = arith.constant dense<0.000000e+00> : vector<8x128xf32>
    %8 = tpu.matmul %5, %7, %cst_9 {dimension_numbers = #tpu.dot_dimension_numbers<[1], [0], [0], [1], [0, 0, 1, 1], [], []>} : vector<8x128xf32>, vector<128x128xf32>, vector<8x128xf32> -> vector<8x128xf32>
    %c0_10 = arith.constant 0 : index
    %c0_11 = arith.constant 0 : index
    %9 = vector.load %arg6[%c0_10, %c0_11] : memref<1x128xf32, #tpu.memory_space<vmem>>, vector<1x128xf32>
    %10 = vector.broadcast %9 : vector<1x128xf32> to vector<8x128xf32>
    %11 = arith.addf %8, %10 : vector<8x128xf32>
    %c0_12 = arith.constant 0 : index
    %c0_13 = arith.constant 0 : index
    %12 = vector.load %arg8[%c0_12, %c0_13] : memref<8x128xf32, #tpu.memory_space<vmem>>, vector<8x128xf32>
    tpu.vector_store %arg8[%c0_12, %c0_13], %11 {strides = array<i32>} : memref<8x128xf32, #tpu.memory_space<vmem>>, vector<8x128xf32>,
    return
  }
  func.func @transform_0(%arg0: i32, %arg1: i32) -> (i32, i32) {
    %c0_i32 = arith.constant 0 : i32
    %c0_i32_0 = arith.constant 0 : i32
    return %arg0, %c0_i32 : i32, i32
  }
  func.func @transform_1(%arg0: i32, %arg1: i32) -> (i32, i32) {
    %c0_i32 = arith.constant 0 : i32
    %c0_i32_0 = arith.constant 0 : i32
    return %c0_i32, %arg1 : i32, i32
  }
  func.func @transform_2(%arg0: i32, %arg1: i32) -> (i32, i32) {
    %c0_i32 = arith.constant 0 : i32
    %c0_i32_0 = arith.constant 0 : i32
    return %c0_i32, %arg1 : i32, i32
  }
  func.func @transform_3(%arg0: i32, %arg1: i32) -> (i32, i32) {
    %c0_i32 = arith.constant 0 : i32
    %c0_i32_0 = arith.constant 0 : i32
    return %arg1, %c0_i32 : i32, i32
  }
  func.func @transform_4(%arg0: i32, %arg1: i32) -> (i32, i32) {
    %c0_i32 = arith.constant 0 : i32
    %c0_i32_0 = arith.constant 0 : i32
    %c0_i32_1 = arith.constant 0 : i32
    return %c0_i32, %c0_i32_0 : i32, i32
  }
  func.func @transform_5(%arg0: i32, %arg1: i32) -> (i32, i32) {
    %c0_i32 = arith.constant 0 : i32
    return %arg0, %arg1 : i32, i32
  }
  func.func @transform_6(%arg0: i32, %arg1: i32) -> (i32, i32) {
    %c0_i32 = arith.constant 0 : i32
    %c0_i32_0 = arith.constant 0 : i32
    return %arg0, %c0_i32 : i32, i32
  }
}

</mosaic_0001>

<llo_original>
// kernel: tpu_custom_call.1
$region0: #{tpu_custom_call.1}
  #allocation0 [shape = 'u32[]', space=smem, size = 0x4, offset = 0x4, fixed_abs, tag = 'smem constant byte address 0x4 - core index']
  #allocation1 [shape = 'u32[144,128]{1,0:T(1,128)}', space=vmem, size = 0x12000, scoped, tag = 'internal scratch']
  %s0 = inlined_call_operand.hbm [shape: f32[8,128], index: 0, kind: input, shape index: {}]
  %s1 = inlined_call_operand.hbm [shape: f32[128,128], index: 1, kind: input, shape index: {}]
  %s2 = inlined_call_operand.vmem [shape: f32[1,128], index: 2, kind: input, shape index: {}]
  %s3 = inlined_call_operand.hbm [shape: f32[128,128], index: 3, kind: input, shape index: {}]
  %s4 = inlined_call_operand.vmem [shape: f32[1,128], index: 4, kind: input, shape index: {}]
  %s5 = inlined_call_operand.hbm [shape: f32[8,128], index: 5, kind: output, shape index: {0}]
  %s6 = inlined_call_operand.hbm [shape: f32[8,128], index: 6, kind: output, shape index: {1}]
  %7 = xla_tuple %s5, %s6
  %s8 = sld [smem:[#allocation0]]
  $region50: #{tpu_custom_call.1} parent=0
    _
  %s10 = ssub.s32 1, %s8
  %s11 = scalar_select 0, %s10, %s8
  $region1: #{tpu_custom_call.1} parent=0
    #allocation2 [shape = 'u8[4096]{0}', space=vmem, size = 0x1000, scoped, tag = 'input window, operand 0, single buffered']
    #allocation3 [shape = 's32[1]{0}', space=sflag, size = 0x4, scoped, tag = 'scoped memory for tpu_custom_call.1']
    #allocation4 [shape = 's32[1]{0}', space=sflag, size = 0x4, scoped, tag = 'scoped memory for tpu_custom_call.1']
    #allocation5 [shape = 'u8[65536]{0}', space=vmem, size = 0x10000, scoped, tag = 'input window, operand 1, single buffered']
    #allocation6 [shape = 's32[1]{0}', space=sflag, size = 0x4, scoped, tag = 'scoped memory for tpu_custom_call.1']
    #allocation7 [shape = 'u8[65536]{0}', space=vmem, size = 0x10000, scoped, tag = 'input window, operand 3, single buffered']
    #allocation8 [shape = 'u8[4096]{0}', space=vmem, size = 0x1000, scoped, tag = 'output window, operand 0, single buffered']
    #allocation9 [shape = 'u8[4096]{0}', space=vmem, size = 0x1000, scoped, tag = 'output window, operand 1, single buffered']
    #allocation10 [shape = 's32[1]{0}', space=sflag, size = 0x4, scoped, tag = 'scoped memory for tpu_custom_call.1']
    %12 = vsyncpa [#allocation3], 0
    %13 = vsyncpa [#allocation6], 0
    %14 = vsyncpa [#allocation4], 0
    %15 = vsyncpa [#allocation10], 0
    // Predicated region
    $region2: #{tpu_custom_call.1} parent=1 // pred_check
      _
    $region3: #{tpu_custom_call.1} parent=1 // pred_check_branch
      %17 = sbr.rel (0) target = $region5
    $region4: #{tpu_custom_call.1} parent=1 // pred_region
      %s19 = ssub.s32 128, 128
      %20 = vsyncadd [#allocation3], %s19
      %s22 = sshll.u32 [#allocation2], 4
      %s23 = int_to_ptr.vmem [resolvable:$true] %s22
      %25 = dma.hbm_to_vmem [thread:$0]  %s0, 128, %s23, [#allocation3]
    $region5: #{tpu_custom_call.1} parent=1 // pred_fallthru
      _
    // Predicated region
    $region6: #{tpu_custom_call.1} parent=1 // pred_check
      _
    $region7: #{tpu_custom_call.1} parent=1 // pred_check_branch
      %27 = sbr.rel (0) target = $region9
    $region8: #{tpu_custom_call.1} parent=1 // pred_region
      %s29 = ssub.s32 2048, 2048
      %30 = vsyncadd [#allocation6], %s29
      %s31 = sshll.u32 [#allocation5], 4
      %s32 = int_to_ptr.vmem [resolvable:$true] %s31
      %37 = dma.hbm_to_vmem [thread:$0]  %s1, 2048, %s32, [#allocation6], 128, 128, 8
    $region9: #{tpu_custom_call.1} parent=1 // pred_fallthru
      _
    // Predicated region
    $region10: #{tpu_custom_call.1} parent=1 // pred_check
      _
    $region11: #{tpu_custom_call.1} parent=1 // pred_check_branch
      %39 = sbr.rel (0) target = $region13
    $region12: #{tpu_custom_call.1} parent=1 // pred_region
      _
    $region13: #{tpu_custom_call.1} parent=1 // pred_fallthru
      _
    // Predicated region
    $region14: #{tpu_custom_call.1} parent=1 // pred_check
      _
    $region15: #{tpu_custom_call.1} parent=1 // pred_check_branch
      %41 = sbr.rel (0) target = $region17
    $region16: #{tpu_custom_call.1} parent=1 // pred_region
      %s43 = ssub.s32 2048, 2048
      %44 = vsyncadd [#allocation6], %s43
      %s45 = sshll.u32 [#allocation7], 4
      %s46 = int_to_ptr.vmem [resolvable:$true] %s45
      %51 = dma.hbm_to_vmem [thread:$0]  %s3, 2048, %s46, [#allocation6], 128, 128, 8
    $region17: #{tpu_custom_call.1} parent=1 // pred_fallthru
      _
    // Predicated region
    $region18: #{tpu_custom_call.1} parent=1 // pred_check
      _
    $region19: #{tpu_custom_call.1} parent=1 // pred_check_branch
      %53 = sbr.rel (0) target = $region21
    $region20: #{tpu_custom_call.1} parent=1 // pred_region
      _
    $region21: #{tpu_custom_call.1} parent=1 // pred_fallthru
      _
    // Predicated region
    $region22: #{tpu_custom_call.1} parent=1 // pred_check
      _
    $region23: #{tpu_custom_call.1} parent=1 // pred_check_branch
      %55 = sbr.rel (0) target = $region25
    $region24: #{tpu_custom_call.1} parent=1 // pred_region
      %56 = dma.done [#allocation3], 128
    $region25: #{tpu_custom_call.1} parent=1 // pred_fallthru
      _
    // Predicated region
    $region26: #{tpu_custom_call.1} parent=1 // pred_check
      _
    $region27: #{tpu_custom_call.1} parent=1 // pred_check_branch
      %58 = sbr.rel (0) target = $region29
    $region28: #{tpu_custom_call.1} parent=1 // pred_region
      %59 = dma.done [#allocation6], 2048
    $region29: #{tpu_custom_call.1} parent=1 // pred_fallthru
      _
    // Predicated region
    $region30: #{tpu_custom_call.1} parent=1 // pred_check
      _
    $region31: #{tpu_custom_call.1} parent=1 // pred_check_branch
      %61 = sbr.rel (0) target = $region33
    $region32: #{tpu_custom_call.1} parent=1 // pred_region
      %62 = dma.done [#allocation6], 2048
    $region33: #{tpu_custom_call.1} parent=1 // pred_fallthru
      _
    %v63 = vld [vmem:[#allocation2] sm:$0xff]
    %v64 = vld [vmem:[#allocation5] sm:$0xff]
    %v65 = vld [vmem:[#allocation5 + $0x8] sm:$0xff]
    %v66 = vld [vmem:[#allocation5 + $0x10] sm:$0xff]
    %v67 = vld [vmem:[#allocation5 + $0x18] sm:$0xff]
    %v68 = vld [vmem:[#allocation5 + $0x20] sm:$0xff]
    %v69 = vld [vmem:[#allocation5 + $0x28] sm:$0xff]
    %v70 = vld [vmem:[#allocation5 + $0x30] sm:$0xff]
    %v71 = vld [vmem:[#allocation5 + $0x38] sm:$0xff]
    %v72 = vld [vmem:[#allocation5 + $0x40] sm:$0xff]
    %v73 = vld [vmem:[#allocation5 + $0x48] sm:$0xff]
    %v74 = vld [vmem:[#allocation5 + $0x50] sm:$0xff]
    %v75 = vld [vmem:[#allocation5 + $0x58] sm:$0xff]
    %v76 = vld [vmem:[#allocation5 + $0x60] sm:$0xff]
    %v77 = vld [vmem:[#allocation5 + $0x68] sm:$0xff]
    %v78 = vld [vmem:[#allocation5 + $0x70] sm:$0xff]
    %v79 = vld [vmem:[#allocation5 + $0x78] sm:$0xff]
    %v80 = vld [vmem:[%s2] sm:$0x1]
    %v82 = vlaneseq
    %v83 = vshrl.u32 %v82, 7
    %v84 = vsub.s32 0, %v83
    %v85 = vrot.slane %v80, %v84
    %87 = vmatprep.subr.mxu0 0.0
    %88 = vmatpush1.msra.mxu0 %v79
    %89 = vmatprep.subr.mxu0 0.0
    %90 = vmatpush1.msra.mxu0 %v78
    %91 = vmatprep.subr.mxu0 0.0
    %92 = vmatpush1.msra.mxu0 %v77
    %93 = vmatprep.subr.mxu0 0.0
    %94 = vmatpush1.msra.mxu0 %v76
    %95 = vmatprep.subr.mxu0 0.0
    %96 = vmatpush1.msra.mxu0 %v75
    %97 = vmatprep.subr.mxu0 0.0
    %98 = vmatpush1.msra.mxu0 %v74
    %99 = vmatprep.subr.mxu0 0.0
    %100 = vmatpush1.msra.mxu0 %v73
    %101 = vmatprep.subr.mxu0 0.0
    %102 = vmatpush1.msra.mxu0 %v72
    %103 = vmatprep.subr.mxu0 0.0
    %104 = vmatpush1.msra.mxu0 %v71
    %105 = vmatprep.subr.mxu0 0.0
    %106 = vmatpush1.msra.mxu0 %v70
    %107 = vmatprep.subr.mxu0 0.0
    %108 = vmatpush1.msra.mxu0 %v69
    %109 = vmatprep.subr.mxu0 0.0
    %110 = vmatpush1.msra.mxu0 %v68
    %111 = vmatprep.subr.mxu0 0.0
    %112 = vmatpush1.msra.mxu0 %v67
    %113 = vmatprep.subr.mxu0 0.0
    %114 = vmatpush1.msra.mxu0 %v66
    %115 = vmatprep.subr.mxu0 0.0
    %116 = vmatpush1.msra.mxu0 %v65
    %117 = vmatprep.subr.mxu0 0.0
    %118 = vmatpush1.msra.mxu0 %v64
    %119 = vmatprep.subr.mxu0 0.0
    %120 = vmatpush2.msra.mxu0 0.0
    %121 = vmatprep.subr.mxu0 0.0
    %122 = vmatpush2.msra.mxu0 0.0
    %123 = vmatprep.subr.mxu0 0.0
    %124 = vmatpush2.msra.mxu0 0.0
    %125 = vmatprep.subr.mxu0 0.0
    %126 = vmatpush2.msra.mxu0 0.0
    %127 = vmatprep.subr.mxu0 0.0
    %128 = vmatpush2.msra.mxu0 0.0
    %129 = vmatprep.subr.mxu0 0.0
    %130 = vmatpush2.msra.mxu0 0.0
    %131 = vmatprep.subr.mxu0 0.0
    %132 = vmatpush2.msra.mxu0 0.0
    %133 = vmatprep.subr.mxu0 0.0
    %134 = vmatpush2.msra.mxu0 0.0
    %135 = vmatprep.subr.mxu0 0.0
    %136 = vmatpush2.msra.mxu0 0.0
    %137 = vmatprep.subr.mxu0 0.0
    %138 = vmatpush2.msra.mxu0 0.0
    %139 = vmatprep.subr.mxu0 0.0
    %140 = vmatpush2.msra.mxu0 0.0
    %141 = vmatprep.subr.mxu0 0.0
    %142 = vmatpush2.msra.mxu0 0.0
    %143 = vmatprep.subr.mxu0 0.0
    %144 = vmatpush2.msra.mxu0 0.0
    %145 = vmatprep.subr.mxu0 0.0
    %146 = vmatpush2.msra.mxu0 0.0
    %147 = vmatprep.subr.mxu0 0.0
    %148 = vmatpush2.msra.mxu0 0.0
    %149 = vmatprep.subr.mxu0 0.0
    %150 = vmatpush2.msra.mxu0 0.0
    %151 = vmatprep.mubr.f32.mxu0 0.0
    %152 = vmatmul.mubr.f32.gmra.mxu0 %v63
    %v153 = vpop.f32.mrf.mxu0
    %v154 = vadd.f32 %v85, %v153
    %v155 = vpop.f32.mrf.mxu0
    %156 = vdwg.mxu0
    %157 = vst [vmem:[#allocation8] sm:$0xff] %v154
    %v158 = vld [vmem:[#allocation7] sm:$0xff]
    %v159 = vld [vmem:[#allocation7 + $0x8] sm:$0xff]
    %v160 = vld [vmem:[#allocation7 + $0x10] sm:$0xff]
    %v161 = vld [vmem:[#allocation7 + $0x18] sm:$0xff]
    %v162 = vld [vmem:[#allocation7 + $0x20] sm:$0xff]
    %v163 = vld [vmem:[#allocation7 + $0x28] sm:$0xff]
    %v164 = vld [vmem:[#allocation7 + $0x30] sm:$0xff]
    %v165 = vld [vmem:[#allocation7 + $0x38] sm:$0xff]
    %v166 = vld [vmem:[#allocation7 + $0x40] sm:$0xff]
    %v167 = vld [vmem:[#allocation7 + $0x48] sm:$0xff]
    %v168 = vld [vmem:[#allocation7 + $0x50] sm:$0xff]
    %v169 = vld [vmem:[#allocation7 + $0x58] sm:$0xff]
    %v170 = vld [vmem:[#allocation7 + $0x60] sm:$0xff]
    %v171 = vld [vmem:[#allocation7 + $0x68] sm:$0xff]
    %v172 = vld [vmem:[#allocation7 + $0x70] sm:$0xff]
    %v173 = vld [vmem:[#allocation7 + $0x78] sm:$0xff]
    %v174 = vld [vmem:[%s4] sm:$0x1]
    %v176 = vlaneseq
    %v177 = vshrl.u32 %v176, 7
    %v178 = vsub.s32 0, %v177
    %v179 = vrot.slane %v174, %v178
    %181 = vmatprep.subr.mxu0 0.0
    %182 = vmatpush1.msra.mxu0 %v173
    %183 = vmatprep.subr.mxu0 0.0
    %184 = vmatpush1.msra.mxu0 %v172
    %185 = vmatprep.subr.mxu0 0.0
    %186 = vmatpush1.msra.mxu0 %v171
    %187 = vmatprep.subr.mxu0 0.0
    %188 = vmatpush1.msra.mxu0 %v170
    %189 = vmatprep.subr.mxu0 0.0
    %190 = vmatpush1.msra.mxu0 %v169
    %191 = vmatprep.subr.mxu0 0.0
    %192 = vmatpush1.msra.mxu0 %v168
    %193 = vmatprep.subr.mxu0 0.0
    %194 = vmatpush1.msra.mxu0 %v167
    %195 = vmatprep.subr.mxu0 0.0
    %196 = vmatpush1.msra.mxu0 %v166
    %197 = vmatprep.subr.mxu0 0.0
    %198 = vmatpush1.msra.mxu0 %v165
    %199 = vmatprep.subr.mxu0 0.0
    %200 = vmatpush1.msra.mxu0 %v164
    %201 = vmatprep.subr.mxu0 0.0
    %202 = vmatpush1.msra.mxu0 %v163
    %203 = vmatprep.subr.mxu0 0.0
    %204 = vmatpush1.msra.mxu0 %v162
    %205 = vmatprep.subr.mxu0 0.0
    %206 = vmatpush1.msra.mxu0 %v161
    %207 = vmatprep.subr.mxu0 0.0
    %208 = vmatpush1.msra.mxu0 %v160
    %209 = vmatprep.subr.mxu0 0.0
    %210 = vmatpush1.msra.mxu0 %v159
    %211 = vmatprep.subr.mxu0 0.0
    %212 = vmatpush1.msra.mxu0 %v158
    %213 = vmatprep.subr.mxu0 0.0
    %214 = vmatpush2.msra.mxu0 0.0
    %215 = vmatprep.subr.mxu0 0.0
    %216 = vmatpush2.msra.mxu0 0.0
    %217 = vmatprep.subr.mxu0 0.0
    %218 = vmatpush2.msra.mxu0 0.0
    %219 = vmatprep.subr.mxu0 0.0
    %220 = vmatpush2.msra.mxu0 0.0
    %221 = vmatprep.subr.mxu0 0.0
    %222 = vmatpush2.msra.mxu0 0.0
    %223 = vmatprep.subr.mxu0 0.0
    %224 = vmatpush2.msra.mxu0 0.0
    %225 = vmatprep.subr.mxu0 0.0
    %226 = vmatpush2.msra.mxu0 0.0
    %227 = vmatprep.subr.mxu0 0.0
    %228 = vmatpush2.msra.mxu0 0.0
    %229 = vmatprep.subr.mxu0 0.0
    %230 = vmatpush2.msra.mxu0 0.0
    %231 = vmatprep.subr.mxu0 0.0
    %232 = vmatpush2.msra.mxu0 0.0
    %233 = vmatprep.subr.mxu0 0.0
    %234 = vmatpush2.msra.mxu0 0.0
    %235 = vmatprep.subr.mxu0 0.0
    %236 = vmatpush2.msra.mxu0 0.0
    %237 = vmatprep.subr.mxu0 0.0
    %238 = vmatpush2.msra.mxu0 0.0
    %239 = vmatprep.subr.mxu0 0.0
    %240 = vmatpush2.msra.mxu0 0.0
    %241 = vmatprep.subr.mxu0 0.0
    %242 = vmatpush2.msra.mxu0 0.0
    %243 = vmatprep.subr.mxu0 0.0
    %244 = vmatpush2.msra.mxu0 0.0
    %245 = vmatprep.mubr.f32.mxu0 0.0
    %246 = vmatmul.mubr.f32.gmra.mxu0 %v154
    %v247 = vpop.f32.mrf.mxu0
    %v248 = vadd.f32 %v179, %v247
    %v249 = vpop.f32.mrf.mxu0
    %250 = vdwg.mxu0
    %251 = vst [vmem:[#allocation9] sm:$0xff] %v248
    // Predicated region
    $region34: #{tpu_custom_call.1} parent=1 // pred_check
      _
    $region35: #{tpu_custom_call.1} parent=1 // pred_check_branch
      %253 = sbr.rel (0) target = $region37
    $region36: #{tpu_custom_call.1} parent=1 // pred_region
      %s255 = ssub.s32 128, 128
      %256 = vsyncadd [#allocation4], %s255
      %s258 = sshll.u32 [#allocation8], 4
      %s259 = int_to_ptr.vmem [resolvable:$true] %s258
      %261 = dma.vmem_to_hbm [thread:$0]  %s259, 128, %s5, [#allocation4]
    $region37: #{tpu_custom_call.1} parent=1 // pred_fallthru
      _
    // Predicated region
    $region38: #{tpu_custom_call.1} parent=1 // pred_check
      _
    $region39: #{tpu_custom_call.1} parent=1 // pred_check_branch
      %263 = sbr.rel (0) target = $region41
    $region40: #{tpu_custom_call.1} parent=1 // pred_region
      %s265 = ssub.s32 128, 128
      %266 = vsyncadd [#allocation10], %s265
      %s268 = sshll.u32 [#allocation9], 4
      %s269 = int_to_ptr.vmem [resolvable:$true] %s268
      %271 = dma.vmem_to_hbm [thread:$0]  %s269, 128, %s6, [#allocation10]
    $region41: #{tpu_custom_call.1} parent=1 // pred_fallthru
      _
    // Predicated region
    $region42: #{tpu_custom_call.1} parent=1 // pred_check
      _
    $region43: #{tpu_custom_call.1} parent=1 // pred_check_branch
      %273 = sbr.rel (0) target = $region45
    $region44: #{tpu_custom_call.1} parent=1 // pred_region
      %274 = dma.done [#allocation4], 128
    $region45: #{tpu_custom_call.1} parent=1 // pred_fallthru
      _
    // Predicated region
    $region46: #{tpu_custom_call.1} parent=1 // pred_check
      _
    $region47: #{tpu_custom_call.1} parent=1 // pred_check_branch
      %276 = sbr.rel (0) target = $region49
    $region48: #{tpu_custom_call.1} parent=1 // pred_region
      %277 = dma.done [#allocation10], 128
    $region49: #{tpu_custom_call.1} parent=1 // pred_fallthru
      _
    %278 = vsyncpa [#allocation3], 1
    %279 = vsyncpa [#allocation6], 1
    %280 = vsyncpa [#allocation4], 1
    %281 = vsyncpa [#allocation10], 1

</llo_original>
